<compile_context>
chip_gen: v7x
topology: tpu7x:2x2x1
jax: 0.10.0
libtpu: 0.0.40
codegen_flags: <defaults>
</compile_context>

<pallas_src>
import functools

import jax
import jax.numpy as jnp
from jax import lax
from jax.experimental import pallas as pl
from jax.experimental.pallas import tpu as pltpu


def _spmb_kernel(x_ref, wdw_ref, mask_ref, b1_ref, wpwt_ref, b2_ref, out_ref, *, W):
    """One image: (1, C, H*W) -> (1, Cout, H*W), channel-major and lane-dense.

    x_ref    : (1, C, HW)    f32/bf16  input image, flat spatial on lanes
    wdw_ref  : (C, 9)        f32       depthwise taps, col = kh*3+kw (BN1 scale folded)
    mask_ref : (9, HW)       f32       per-tap validity mask (image H/W edges)
    b1_ref   : (C, 1)        f32       folded BN1 bias
    wpwt_ref : (Cout, C)     bf16      pointwise weights (BN2 scale folded)
    b2_ref   : (Cout, 1)     f32       folded BN2 bias
    out_ref  : (1, Cout, HW) bf16      channel-major, lane-dense output
    """
    HW = x_ref.shape[2]

    x = x_ref[0].astype(jnp.float32)          # (C, HW)
    wdw = wdw_ref[...]                        # (C, 9)
    masks = mask_ref[...]                     # (9, HW)

    # Depthwise 3x3, stride 1, padding 1.  The neighbour (h+dh, w+dw) of flat
    # index f = h*W + w sits at f + dh*W + dw, fetched with one static lane
    # roll (XLU slot) per tap.  The per-tap mask zeroes every lane whose
    # neighbour falls outside the image, which also covers the roll wrapping at
    # the first/last rows and the w-edge bleed into the adjacent row.
    acc = x * wdw[:, 4:5]                     # centre tap: no roll, no mask
    for dh in (-1, 0, 1):
        for dw in (-1, 0, 1):
            if dh == 0 and dw == 0:
                continue
            k = (dh + 1) * 3 + (dw + 1)
            shift = (-(dh * W + dw)) % HW
            nb = pltpu.roll(x, shift, axis=1)              # nb[c,f] = x[c, f+dh*W+dw]
            acc = acc + (nb * masks[k:k + 1, :]) * wdw[:, k:k + 1]

    # BN1 bias (scale already folded into the taps) + swish (sigmoid -> EUP).
    y = acc + b1_ref[...]
    y = y * jax.nn.sigmoid(y)

    # Pointwise 1x1 on the MXU: canonical (Cout, C) x (C, HW) contraction with
    # bf16 operands and f32 accumulation.  Output lane dim is HW (dense stores).
    z = lax.dot_general(wpwt_ref[...], y.astype(jnp.bfloat16),
                        dimension_numbers=(((1,), (0,)), ((), ())),
                        preferred_element_type=jnp.float32)
    z = z + b2_ref[...]                       # BN2 bias
    z = z * jax.nn.sigmoid(z)                 # swish

    out_ref[0] = z.astype(out_ref.dtype)


def spmb_block_forward(x_nchw, w_dw, bn1, w_pw, bn2, *, stride=1, eps=1e-5,
                       out_dtype=jnp.bfloat16):
    """x_nchw: (N, Cin, H, W) f32 or bf16.  w_dw: (3, 3, Cin).  w_pw: (Cin, Cout).
    bn{1,2} = (gamma, beta, running_mean, running_var).  Returns (N, Cout, H, W)."""
    assert stride == 1  # TODO(synk): stride>1 (strided depthwise) not implemented.
    N, C, H, W = x_nchw.shape
    Cout = w_pw.shape[1]
    HW = H * W

    # NCHW is already channel-major: flattening to (N, C, H*W) is a free
    # reshape, and the kernel's (C, HW) tiles are lane-dense for any C.
    x = x_nchw.reshape(N, C, HW)

    g1, be1, m1, v1 = bn1
    g2, be2, m2, v2 = bn2
    s1 = g1 * lax.rsqrt(v1 + eps)
    b1 = (be1 - m1 * s1).reshape(C, 1).astype(jnp.float32)
    s2 = g2 * lax.rsqrt(v2 + eps)
    b2 = (be2 - m2 * s2).reshape(Cout, 1).astype(jnp.float32)

    # Fold BN scales into the conv weights (one-time constant transforms).
    wdw9 = (w_dw.reshape(9, C) * s1).T.astype(jnp.float32)        # (C, 9)
    # bf16 weights on every generation (v5e included): halves weight DMA/VMEM,
    # the MXU still accumulates in f32.
    wpwt = (w_pw * s2).T.astype(jnp.bfloat16)                     # (Cout, C)

    # Per-tap edge masks, built once here (not per grid step in the kernel):
    # tap k = kh*3+kw is valid at flat f = h*W+w iff (h+kh-1, w+kw-1) is inside.
    f = jnp.arange(HW)
    h, w = f // W, f % W
    mask = jnp.stack(
        [((h + dh >= 0) & (h + dh < H) & (w + dw >= 0) & (w + dw < W))
         for dh in (-1, 0, 1) for dw in (-1, 0, 1)]).astype(jnp.float32)  # (9, HW)

    # Explicit VMEM budget: double-buffered in/out blocks + constant operands
    # + headroom for the in-kernel f32 temporaries (rolled copies, y, z).
    work = (2 * x.dtype.itemsize * C * HW            # input block (x2 pipeline bufs)
            + 2 * 2 * Cout * HW                      # bf16 output block (x2)
            + 2 * (wdw9.size * 4 + mask.size * 4 + b1.size * 4
                   + wpwt.size * 2 + b2.size * 4)
            + 8 * 4 * C * HW)                        # f32 temporaries headroom
    vmem_limit = int(min(max(2 * work, 16 << 20), 96 << 20))

    out = pl.pallas_call(
        functools.partial(_spmb_kernel, W=W),
        out_shape=jax.ShapeDtypeStruct((N, Cout, HW), out_dtype),
        grid_spec=pltpu.PrefetchScalarGridSpec(
            num_scalar_prefetch=0,
            grid=(N,),                               # images shard across TCs
            in_specs=[
                pl.BlockSpec((1, C, HW), lambda n: (n, 0, 0)),
                # Constant-index operands: their block index never changes, so
                # they are DMA'd only once.
                # TODO(synk): single-buffer them (pl.Buffered(1)) to reclaim the
                # second pipeline buffer of the big pointwise weight on v7x.
                pl.BlockSpec((C, 9), lambda n: (0, 0)),
                pl.BlockSpec((9, HW), lambda n: (0, 0)),
                pl.BlockSpec((C, 1), lambda n: (0, 0)),
                pl.BlockSpec((Cout, C), lambda n: (0, 0)),
                pl.BlockSpec((Cout, 1), lambda n: (0, 0)),
            ],
            out_specs=pl.BlockSpec((1, Cout, HW), lambda n: (n, 0, 0)),
        ),
        compiler_params=pltpu.CompilerParams(
            dimension_semantics=("parallel",),
            vmem_limit_bytes=vmem_limit),
    )(x, wdw9, mask, b1, wpwt, b2)

    # (N, Cout, H*W) is already channel-major (NCHW): reshape back is free.
    # TODO(synk): for late 7x7 layers (H*W < 128) pack several images into one
    # grid step's matmul free dim, and for 112x112 early layers on v7x (64 MiB
    # VMEM) / tiny N add an H-tiled grid axis with a 1-row halo to raise the
    # per-core trip count above 1.
    return out.reshape(N, Cout, H, W)


def reference_forward(x_nchw, w_dw, bn1, w_pw, bn2, *, eps=1e-5):
    """Pure-JAX f32 reference (NHWC internally) for correctness checking."""
    x = jnp.transpose(x_nchw.astype(jnp.float32), (0, 2, 3, 1))
    N, H, W, C = x.shape
    g1, be1, m1, v1 = bn1
    g2, be2, m2, v2 = bn2

    dw = lax.conv_general_dilated(
        x, w_dw.reshape(3, 3, 1, C),
        window_strides=(1, 1), padding=((1, 1), (1, 1)),
        dimension_numbers=("NHWC", "HWIO", "NHWC"),
        feature_group_count=C)
    y = (dw - m1) / jnp.sqrt(v1 + eps) * g1 + be1
    y = y * jax.nn.sigmoid(y)

    z = jnp.einsum("nhwc,cd->nhwd", y, w_pw)
    z = (z - m2) / jnp.sqrt(v2 + eps) * g2 + be2
    z = z * jax.nn.sigmoid(z)
    return jnp.transpose(z, (0, 3, 1, 2))


def _make_case(key, N, C_in, C_out, H, W):
    ks = jax.random.split(key, 11)
    x = jax.random.normal(ks[0], (N, C_in, H, W), jnp.float32)

    # depthwise conv weight: PyTorch (C_in, 1, 3, 3) -> kernel layout (3, 3, C_in)
    w_dw_torch = jax.random.normal(ks[1], (C_in, 1, 3, 3), jnp.float32) * 0.3
    w_dw = jnp.transpose(w_dw_torch[:, 0], (1, 2, 0))

    bn1 = (jax.random.normal(ks[2], (C_in,)) * 0.1 + 1.0,
           jax.random.normal(ks[3], (C_in,)) * 0.1,
           jax.random.normal(ks[4], (C_in,)) * 0.1,
           jax.nn.softplus(jax.random.normal(ks[5], (C_in,))) + 0.5)

    # pointwise conv weight: PyTorch (C_out, C_in, 1, 1) -> (C_in, C_out)
    w_pw_torch = jax.random.normal(ks[6], (C_out, C_in, 1, 1), jnp.float32) * 0.3
    w_pw = jnp.transpose(w_pw_torch[:, :, 0, 0], (1, 0))

    bn2 = (jax.random.normal(ks[7], (C_out,)) * 0.1 + 1.0,
           jax.random.normal(ks[8], (C_out,)) * 0.1,
           jax.random.normal(ks[9], (C_out,)) * 0.1,
           jax.nn.softplus(jax.random.normal(ks[10], (C_out,))) + 0.5)
    return x, w_dw, bn1, w_pw, bn2


if __name__ == "__main__":
    root = jax.random.PRNGKey(0)
    k_a, k_b = jax.random.split(root, 2)

    # Case A: f32 input, 16x16 spatial (bf16 output + bf16 MXU operands ->
    # tolerance loosened vs. the f32 reference).
    N, C_in, C_out, H, W = 2, 8, 16, 16, 16
    x, w_dw, bn1, w_pw, bn2 = _make_case(k_a, N, C_in, C_out, H, W)
    out = jax.block_until_ready(spmb_block_forward(x, w_dw, bn1, w_pw, bn2))
    ref = reference_forward(x, w_dw, bn1, w_pw, bn2)
    assert out.shape == (N, C_out, H, W) and out.dtype == jnp.bfloat16
    err_a = float(jnp.max(jnp.abs(out.astype(jnp.float32) - ref)))
    assert jnp.allclose(out.astype(jnp.float32), ref, rtol=5e-2, atol=5e-2), (
        "case A max abs err = %f" % err_a)

    # Case B: non-power-of-two W (exercises the lane-roll + mask halo at
    # arbitrary widths) and a bf16 input activation (chained-block fast path).
    N, C_in, C_out, H, W = 2, 8, 16, 16, 24
    x, w_dw, bn1, w_pw, bn2 = _make_case(k_b, N, C_in, C_out, H, W)
    out = jax.block_until_ready(
        spmb_block_forward(x.astype(jnp.bfloat16), w_dw, bn1, w_pw, bn2))
    ref = reference_forward(x, w_dw, bn1, w_pw, bn2)
    assert out.shape == (N, C_out, H, W)
    err_b = float(jnp.max(jnp.abs(out.astype(jnp.float32) - ref)))
    assert jnp.allclose(out.astype(jnp.float32), ref, rtol=5e-2, atol=5e-2), (
        "case B max abs err = %f" % err_b)

    print("KERNEL_OK")
</pallas_src>

<mosaic_0001>
module attributes {stable_mosaic.version = 11 : i64} {
  func.func @_spmb_kernel(%arg0: i32, %arg1: memref<1x8x256xf32, #tpu.memory_space<vmem>>, %arg2: memref<8x9xf32, #tpu.memory_space<vmem>>, %arg3: memref<9x256xf32, #tpu.memory_space<vmem>>, %arg4: memref<8x1xf32, #tpu.memory_space<vmem>>, %arg5: memref<16x8xbf16, #tpu.memory_space<vmem>>, %arg6: memref<16x1xf32, #tpu.memory_space<vmem>>, %arg7: memref<1x16x256xbf16, #tpu.memory_space<vmem>>) attributes {dimension_semantics = [#tpu.dimension_semantics<parallel>], iteration_bounds = array<i64: 2>, scalar_prefetch = 0 : i64, scratch_operands = 0 : i64, tpu.core_type = #tpu.core_type<tc>, window_params = [{transform_indices = @transform_0, window_bounds = array<i64: 1, 8, 256>}, {pipeline_mode = #tpu.pipeline_mode<synchronous>, transform_indices = @transform_1, window_bounds = array<i64: 8, 9>}, {pipeline_mode = #tpu.pipeline_mode<synchronous>, transform_indices = @transform_2, window_bounds = array<i64: 9, 256>}, {pipeline_mode = #tpu.pipeline_mode<synchronous>, transform_indices = @transform_3, window_bounds = array<i64: 8, 1>}, {pipeline_mode = #tpu.pipeline_mode<synchronous>, transform_indices = @transform_4, window_bounds = array<i64: 16, 8>}, {pipeline_mode = #tpu.pipeline_mode<synchronous>, transform_indices = @transform_5, window_bounds = array<i64: 16, 1>}, {transform_indices = @transform_6, window_bounds = array<i64: 1, 16, 256>}]} {
    %c0 = arith.constant 0 : index
    %c0_0 = arith.constant 0 : index
    %c0_1 = arith.constant 0 : index
    %0 = vector.load %arg1[%c0, %c0_0, %c0_1] : memref<1x8x256xf32, #tpu.memory_space<vmem>>, vector<1x8x256xf32>
    %1 = vector.shape_cast %0 : vector<1x8x256xf32> to vector<8x256xf32>
    %c0_2 = arith.constant 0 : index
    %c0_3 = arith.constant 0 : index
    %2 = vector.load %arg2[%c0_2, %c0_3] : memref<8x9xf32, #tpu.memory_space<vmem>>, vector<8x9xf32>
    %c0_4 = arith.constant 0 : index
    %c0_5 = arith.constant 0 : index
    %3 = vector.load %arg3[%c0_4, %c0_5] : memref<9x256xf32, #tpu.memory_space<vmem>>, vector<9x256xf32>
    %4 = vector.extract_strided_slice %2 {offsets = [0, 4], sizes = [8, 1], strides = [1, 1]} : vector<8x9xf32> to vector<8x1xf32>
    %5 = vector.broadcast %4 : vector<8x1xf32> to vector<8x256xf32>
    %6 = arith.mulf %1, %5 : vector<8x256xf32>
    %c17_i32 = arith.constant 17 : i32
    %7 = tpu.dynamic_rotate %1 by %c17_i32 dim 1 : vector<8x256xf32>, i32 -> vector<8x256xf32>
    %8 = vector.extract_strided_slice %3 {offsets = [0, 0], sizes = [1, 256], strides = [1, 1]} : vector<9x256xf32> to vector<1x256xf32>
    %9 = vector.broadcast %8 : vector<1x256xf32> to vector<8x256xf32>
    %10 = arith.mulf %7, %9 : vector<8x256xf32>
    %11 = vector.extract_strided_slice %2 {offsets = [0, 0], sizes = [8, 1], strides = [1, 1]} : vector<8x9xf32> to vector<8x1xf32>
    %12 = vector.broadcast %11 : vector<8x1xf32> to vector<8x256xf32>
    %13 = arith.mulf %10, %12 : vector<8x256xf32>
    %14 = arith.addf %6, %13 : vector<8x256xf32>
    %c16_i32 = arith.constant 16 : i32
    %15 = tpu.dynamic_rotate %1 by %c16_i32 dim 1 : vector<8x256xf32>, i32 -> vector<8x256xf32>
    %16 = vector.extract_strided_slice %3 {offsets = [1, 0], sizes = [1, 256], strides = [1, 1]} : vector<9x256xf32> to vector<1x256xf32>
    %17 = vector.broadcast %16 : vector<1x256xf32> to vector<8x256xf32>
    %18 = arith.mulf %15, %17 : vector<8x256xf32>
    %19 = vector.extract_strided_slice %2 {offsets = [0, 1], sizes = [8, 1], strides = [1, 1]} : vector<8x9xf32> to vector<8x1xf32>
    %20 = vector.broadcast %19 : vector<8x1xf32> to vector<8x256xf32>
    %21 = arith.mulf %18, %20 : vector<8x256xf32>
    %22 = arith.addf %14, %21 : vector<8x256xf32>
    %c15_i32 = arith.constant 15 : i32
    %23 = tpu.dynamic_rotate %1 by %c15_i32 dim 1 : vector<8x256xf32>, i32 -> vector<8x256xf32>
    %24 = vector.extract_strided_slice %3 {offsets = [2, 0], sizes = [1, 256], strides = [1, 1]} : vector<9x256xf32> to vector<1x256xf32>
    %25 = vector.broadcast %24 : vector<1x256xf32> to vector<8x256xf32>
    %26 = arith.mulf %23, %25 : vector<8x256xf32>
    %27 = vector.extract_strided_slice %2 {offsets = [0, 2], sizes = [8, 1], strides = [1, 1]} : vector<8x9xf32> to vector<8x1xf32>
    %28 = vector.broadcast %27 : vector<8x1xf32> to vector<8x256xf32>
    %29 = arith.mulf %26, %28 : vector<8x256xf32>
    %30 = arith.addf %22, %29 : vector<8x256xf32>
    %c1_i32 = arith.constant 1 : i32
    %31 = tpu.dynamic_rotate %1 by %c1_i32 dim 1 : vector<8x256xf32>, i32 -> vector<8x256xf32>
    %32 = vector.extract_strided_slice %3 {offsets = [3, 0], sizes = [1, 256], strides = [1, 1]} : vector<9x256xf32> to vector<1x256xf32>
    %33 = vector.broadcast %32 : vector<1x256xf32> to vector<8x256xf32>
    %34 = arith.mulf %31, %33 : vector<8x256xf32>
    %35 = vector.extract_strided_slice %2 {offsets = [0, 3], sizes = [8, 1], strides = [1, 1]} : vector<8x9xf32> to vector<8x1xf32>
    %36 = vector.broadcast %35 : vector<8x1xf32> to vector<8x256xf32>
    %37 = arith.mulf %34, %36 : vector<8x256xf32>
    %38 = arith.addf %30, %37 : vector<8x256xf32>
    %c255_i32 = arith.constant 255 : i32
    %39 = tpu.dynamic_rotate %1 by %c255_i32 dim 1 : vector<8x256xf32>, i32 -> vector<8x256xf32>
    %40 = vector.extract_strided_slice %3 {offsets = [5, 0], sizes = [1, 256], strides = [1, 1]} : vector<9x256xf32> to vector<1x256xf32>
    %41 = vector.broadcast %40 : vector<1x256xf32> to vector<8x256xf32>
    %42 = arith.mulf %39, %41 : vector<8x256xf32>
    %43 = vector.extract_strided_slice %2 {offsets = [0, 5], sizes = [8, 1], strides = [1, 1]} : vector<8x9xf32> to vector<8x1xf32>
    %44 = vector.broadcast %43 : vector<8x1xf32> to vector<8x256xf32>
    %45 = arith.mulf %42, %44 : vector<8x256xf32>
    %46 = arith.addf %38, %45 : vector<8x256xf32>
    %c241_i32 = arith.constant 241 : i32
    %47 = tpu.dynamic_rotate %1 by %c241_i32 dim 1 : vector<8x256xf32>, i32 -> vector<8x256xf32>
    %48 = vector.extract_strided_slice %3 {offsets = [6, 0], sizes = [1, 256], strides = [1, 1]} : vector<9x256xf32> to vector<1x256xf32>
    %49 = vector.broadcast %48 : vector<1x256xf32> to vector<8x256xf32>
    %50 = arith.mulf %47, %49 : vector<8x256xf32>
    %51 = vector.extract_strided_slice %2 {offsets = [0, 6], sizes = [8, 1], strides = [1, 1]} : vector<8x9xf32> to vector<8x1xf32>
    %52 = vector.broadcast %51 : vector<8x1xf32> to vector<8x256xf32>
    %53 = arith.mulf %50, %52 : vector<8x256xf32>
    %54 = arith.addf %46, %53 : vector<8x256xf32>
    %c240_i32 = arith.constant 240 : i32
    %55 = tpu.dynamic_rotate %1 by %c240_i32 dim 1 : vector<8x256xf32>, i32 -> vector<8x256xf32>
    %56 = vector.extract_strided_slice %3 {offsets = [7, 0], sizes = [1, 256], strides = [1, 1]} : vector<9x256xf32> to vector<1x256xf32>
    %57 = vector.broadcast %56 : vector<1x256xf32> to vector<8x256xf32>
    %58 = arith.mulf %55, %57 : vector<8x256xf32>
    %59 = vector.extract_strided_slice %2 {offsets = [0, 7], sizes = [8, 1], strides = [1, 1]} : vector<8x9xf32> to vector<8x1xf32>
    %60 = vector.broadcast %59 : vector<8x1xf32> to vector<8x256xf32>
    %61 = arith.mulf %58, %60 : vector<8x256xf32>
    %62 = arith.addf %54, %61 : vector<8x256xf32>
    %c239_i32 = arith.constant 239 : i32
    %63 = tpu.dynamic_rotate %1 by %c239_i32 dim 1 : vector<8x256xf32>, i32 -> vector<8x256xf32>
    %64 = vector.extract_strided_slice %3 {offsets = [8, 0], sizes = [1, 256], strides = [1, 1]} : vector<9x256xf32> to vector<1x256xf32>
    %65 = vector.broadcast %64 : vector<1x256xf32> to vector<8x256xf32>
    %66 = arith.mulf %63, %65 : vector<8x256xf32>
    %67 = vector.extract_strided_slice %2 {offsets = [0, 8], sizes = [8, 1], strides = [1, 1]} : vector<8x9xf32> to vector<8x1xf32>
    %68 = vector.broadcast %67 : vector<8x1xf32> to vector<8x256xf32>
    %69 = arith.mulf %66, %68 : vector<8x256xf32>
    %70 = arith.addf %62, %69 : vector<8x256xf32>
    %c0_6 = arith.constant 0 : index
    %c0_7 = arith.constant 0 : index
    %71 = vector.load %arg4[%c0_6, %c0_7] : memref<8x1xf32, #tpu.memory_space<vmem>>, vector<8x1xf32>
    %72 = vector.broadcast %71 : vector<8x1xf32> to vector<8x256xf32>
    %73 = arith.addf %70, %72 : vector<8x256xf32>
    %74 = arith.negf %73 : vector<8x256xf32>
    %75 = math.exp %74 : vector<8x256xf32>
    %cst = arith.constant 1.000000e+00 : f32
    %76 = vector.broadcast %cst : f32 to vector<8x256xf32>
    %77 = arith.addf %76, %75 : vector<8x256xf32>
    %78 = arith.divf %76, %77 : vector<8x256xf32>
    %79 = arith.mulf %73, %78 : vector<8x256xf32>
    %c0_8 = arith.constant 0 : index
    %c0_9 = arith.constant 0 : index
    %80 = vector.load %arg5[%c0_8, %c0_9] : memref<16x8xbf16, #tpu.memory_space<vmem>>, vector<16x8xbf16>
    %81 = arith.truncf %79 : vector<8x256xf32> to vector<8x256xbf16>
    %cst_10 = arith.constant dense<0.000000e+00> : vector<16x256xf32>
    %82 = tpu.matmul %80, %81, %cst_10 {dimension_numbers = #tpu.dot_dimension_numbers<[1], [0], [0], [1], [0, 0, 1, 1], [], []>} : vector<16x8xbf16>, vector<8x256xbf16>, vector<16x256xf32> -> vector<16x256xf32>
    %c0_11 = arith.constant 0 : index
    %c0_12 = arith.constant 0 : index
    %83 = vector.load %arg6[%c0_11, %c0_12] : memref<16x1xf32, #tpu.memory_space<vmem>>, vector<16x1xf32>
    %84 = vector.broadcast %83 : vector<16x1xf32> to vector<16x256xf32>
    %85 = arith.addf %82, %84 : vector<16x256xf32>
    %86 = arith.negf %85 : vector<16x256xf32>
    %87 = math.exp %86 : vector<16x256xf32>
    %cst_13 = arith.constant 1.000000e+00 : f32
    %88 = vector.broadcast %cst_13 : f32 to vector<16x256xf32>
    %89 = arith.addf %88, %87 : vector<16x256xf32>
    %90 = arith.divf %88, %89 : vector<16x256xf32>
    %91 = arith.mulf %85, %90 : vector<16x256xf32>
    %92 = arith.truncf %91 : vector<16x256xf32> to vector<16x256xbf16>
    %c0_14 = arith.constant 0 : index
    %c0_15 = arith.constant 0 : index
    %c0_16 = arith.constant 0 : index
    %93 = vector.load %arg7[%c0_14, %c0_15, %c0_16] : memref<1x16x256xbf16, #tpu.memory_space<vmem>>, vector<1x16x256xbf16>
    %94 = vector.shape_cast %93 : vector<1x16x256xbf16> to vector<16x256xbf16>
    %95 = vector.shape_cast %92 : vector<16x256xbf16> to vector<1x16x256xbf16>
    tpu.vector_store %arg7[%c0_14, %c0_15, %c0_16], %95 {strides = array<i32>} : memref<1x16x256xbf16, #tpu.memory_space<vmem>>, vector<1x16x256xbf16>,
    return
  }
  func.func @transform_0(%arg0: i32) -> (i32, i32, i32) {
    %c0_i32 = arith.constant 0 : i32
    %c0_i32_0 = arith.constant 0 : i32
    %c0_i32_1 = arith.constant 0 : i32
    return %arg0, %c0_i32, %c0_i32_0 : i32, i32, i32
  }
  func.func @transform_1(%arg0: i32) -> (i32, i32) {
    %c0_i32 = arith.constant 0 : i32
    %c0_i32_0 = arith.constant 0 : i32
    %c0_i32_1 = arith.constant 0 : i32
    return %c0_i32, %c0_i32_0 : i32, i32
  }
  func.func @transform_2(%arg0: i32) -> (i32, i32) {
    %c0_i32 = arith.constant 0 : i32
    %c0_i32_0 = arith.constant 0 : i32
    %c0_i32_1 = arith.constant 0 : i32
    return %c0_i32, %c0_i32_0 : i32, i32
  }
  func.func @transform_3(%arg0: i32) -> (i32, i32) {
    %c0_i32 = arith.constant 0 : i32
    %c0_i32_0 = arith.constant 0 : i32
    %c0_i32_1 = arith.constant 0 : i32
    return %c0_i32, %c0_i32_0 : i32, i32
  }
  func.func @transform_4(%arg0: i32) -> (i32, i32) {
    %c0_i32 = arith.constant 0 : i32
    %c0_i32_0 = arith.constant 0 : i32
    %c0_i32_1 = arith.constant 0 : i32
    return %c0_i32, %c0_i32_0 : i32, i32
  }
  func.func @transform_5(%arg0: i32) -> (i32, i32) {
    %c0_i32 = arith.constant 0 : i32
    %c0_i32_0 = arith.constant 0 : i32
    %c0_i32_1 = arith.constant 0 : i32
    return %c0_i32, %c0_i32_0 : i32, i32
  }
  func.func @transform_6(%arg0: i32) -> (i32, i32, i32) {
    %c0_i32 = arith.constant 0 : i32
    %c0_i32_0 = arith.constant 0 : i32
    %c0_i32_1 = arith.constant 0 : i32
    return %arg0, %c0_i32, %c0_i32_0 : i32, i32, i32
  }
}

</mosaic_0001>

<llo_original>
// kernel: tpu_custom_call.1
$region0: #{tpu_custom_call.1}
  #allocation0 [shape = 'u32[]', space=smem, size = 0x4, offset = 0x4, fixed_abs, tag = 'smem constant byte address 0x4 - core index']
  #allocation1 [shape = 'u32[144,128]{1,0:T(1,128)}', space=vmem, size = 0x12000, scoped, tag = 'internal scratch']
  %s0 = inlined_call_operand.vmem [shape: f32[2,8,256], index: 0, kind: input, shape index: {}]
  %s1 = inlined_call_operand.vmem [shape: f32[8,9], index: 1, kind: input, shape index: {}]
  %s2 = inlined_call_operand.hbm [shape: f32[9,256], index: 2, kind: input, shape index: {}]
  %s3 = inlined_call_operand.vmem [shape: f32[8,1], index: 3, kind: input, shape index: {}]
  %s4 = inlined_call_operand.vmem [shape: bf16[16,8], index: 4, kind: input, shape index: {}]
  %s5 = inlined_call_operand.vmem [shape: f32[16,1], index: 5, kind: input, shape index: {}]
  %s6 = inlined_call_operand.hbm [shape: bf16[2,16,256], index: 6, kind: output, shape index: {}]
  %s7 = sld [smem:[#allocation0]]
  $region61: #{tpu_custom_call.1} parent=0
    _
  %s9 = ssub.s32 1, %s7
  %s10 = scalar_select 0, %s9, %s7
  $region1: #{tpu_custom_call.1} parent=0
    #allocation2 [shape = 'u8[16384]{0}', space=vmem, size = 0x4000, scoped, tag = 'input window, operand 2, single buffered']
    #allocation3 [shape = 's32[2]{0}', space=sflag, size = 0x8, scoped, tag = 'scoped memory for tpu_custom_call.1']
    #allocation4 [shape = 's32[2]{0}', space=sflag, size = 0x8, scoped, tag = 'scoped memory for tpu_custom_call.1']
    #allocation5 [shape = 'u8[16384]{0}', space=vmem, size = 0x4000, scoped, tag = 'output window, operand 0']
    %11 = vsyncpa [#allocation3], 0
    %12 = vsyncpa [#allocation4], 0
    %s13 = scalar_lea.sflag [#allocation4], 1
    %14 = vsyncpa %s13, 0
    loop: start=0, step=1, limit=4
    $region2: #{tpu_custom_call.1} parent=1 // loop_pre_header
      _
    $region3: #{tpu_custom_call.1} parent=1 // loop_header
      %s16 = sphi 0, %s20
      %p17 = scmp.ge.s32.totalorder %s16, 4
      %s26 = sphi 0, %s28
      %s29 = sphi 0, %s26
      %s30 = sphi 0, %s29
      %s46 = sphi 0, %s30
      %s50 = sphi 0, %s50
      %s52 = sphi 0, %s50
      %s53 = sphi 0, %s52
      %s67 = sphi 0, %s53
      %s71 = sphi 0, %s71
      %s73 = sphi 0, %s71
      %s74 = sphi 0, %s73
      %s88 = sphi 0, %s74
      %s92 = sphi 0, %s92
      %s94 = sphi 0, %s92
      %s95 = sphi 0, %s94
      %s109 = sphi 0, %s95
      %s113 = sphi 0, %s113
      %s115 = sphi 0, %s113
      %s116 = sphi 0, %s115
      %s130 = sphi 0, %s116
      %s134 = sphi 0, %s134
      %s136 = sphi 0, %s134
      %s137 = sphi 0, %s136
      %s151 = sphi 0, %s137
      %s157 = sphi 0, %s159
      %s160 = sphi 0, %s157
      %s161 = sphi 0, %s160
      %s177 = sphi 0, %s161
    $region4: #{tpu_custom_call.1} parent=1 // loop_header_branch
      %19 = sbr.rel (%p17) target = $region8
    $region5: #{tpu_custom_call.1} parent=1 // loop_body
      %s21 = ssub.s32 %s16, 1
      %s22 = ssub.s32 %s16, 2
      %s23 = sadd.s32 %s16, 1
      %s24 = ssub.s32 %s16, %s23
      %p25 = scmp.eq.s32.totalorder %s24, 0
      %s27 = sadd.s32 %s26, 1
      %s28 = scalar_select %p25, %s26, %s27
      %p31 = pneg %p25
      %p32 = scmp.eq.s32.totalorder %s16, 1
      %p33 = por %p31, %p32
      %p34 = scmp.ne.s32.totalorder %s26, %s29
      %p35 = scmp.eq.s32.totalorder %s16, 0
      %p36 = por %p34, %p35
      %p37 = scmp.ne.s32.totalorder %s26, %s29
      %p38 = scmp.eq.s32.totalorder %s21, 1
      %p39 = por %p37, %p38
      %p40 = scmp.ne.s32.totalorder %s29, %s30
      %p41 = scmp.eq.s32.totalorder %s21, 0
      %p42 = por %p40, %p41
      %p43 = scmp.ne.s32.totalorder %s29, %s30
      %p44 = scmp.eq.s32.totalorder %s22, 1
      %p45 = por %p43, %p44
      %p47 = scmp.ne.s32.totalorder %s30, %s46
      %p48 = scmp.eq.s32.totalorder %s22, 0
      %p49 = por %p47, %p48
      %s51 = sadd.s32 %s50, 1
      %p54 = scmp.eq.s32.totalorder %s16, 1
      %p55 = scmp.ne.s32.totalorder %s50, %s52
      %p56 = scmp.eq.s32.totalorder %s16, 0
      %p57 = por %p55, %p56
      %p58 = scmp.ne.s32.totalorder %s50, %s52
      %p59 = scmp.eq.s32.totalorder %s21, 1
      %p60 = por %p58, %p59
      %p61 = scmp.ne.s32.totalorder %s52, %s53
      %p62 = scmp.eq.s32.totalorder %s21, 0
      %p63 = por %p61, %p62
      %p64 = scmp.ne.s32.totalorder %s52, %s53
      %p65 = scmp.eq.s32.totalorder %s22, 1
      %p66 = por %p64, %p65
      %p68 = scmp.ne.s32.totalorder %s53, %s67
      %p69 = scmp.eq.s32.totalorder %s22, 0
      %p70 = por %p68, %p69
      %s72 = sadd.s32 %s71, 1
      %p75 = scmp.eq.s32.totalorder %s16, 1
      %p76 = scmp.ne.s32.totalorder %s71, %s73
      %p77 = scmp.eq.s32.totalorder %s16, 0
      %p78 = por %p76, %p77
      %p79 = scmp.ne.s32.totalorder %s71, %s73
      %p80 = scmp.eq.s32.totalorder %s21, 1
      %p81 = por %p79, %p80
      %p82 = scmp.ne.s32.totalorder %s73, %s74
      %p83 = scmp.eq.s32.totalorder %s21, 0
      %p84 = por %p82, %p83
      %p85 = scmp.ne.s32.totalorder %s73, %s74
      %p86 = scmp.eq.s32.totalorder %s22, 1
      %p87 = por %p85, %p86
      %p89 = scmp.ne.s32.totalorder %s74, %s88
      %p90 = scmp.eq.s32.totalorder %s22, 0
      %p91 = por %p89, %p90
      %s93 = sadd.s32 %s92, 1
      %p96 = scmp.eq.s32.totalorder %s16, 1
      %p97 = scmp.ne.s32.totalorder %s92, %s94
      %p98 = scmp.eq.s32.totalorder %s16, 0
      %p99 = por %p97, %p98
      %p100 = scmp.ne.s32.totalorder %s92, %s94
      %p101 = scmp.eq.s32.totalorder %s21, 1
      %p102 = por %p100, %p101
      %p103 = scmp.ne.s32.totalorder %s94, %s95
      %p104 = scmp.eq.s32.totalorder %s21, 0
      %p105 = por %p103, %p104
      %p106 = scmp.ne.s32.totalorder %s94, %s95
      %p107 = scmp.eq.s32.totalorder %s22, 1
      %p108 = por %p106, %p107
      %p110 = scmp.ne.s32.totalorder %s95, %s109
      %p111 = scmp.eq.s32.totalorder %s22, 0
      %p112 = por %p110, %p111
      %s114 = sadd.s32 %s113, 1
      %p117 = scmp.eq.s32.totalorder %s16, 1
      %p118 = scmp.ne.s32.totalorder %s113, %s115
      %p119 = scmp.eq.s32.totalorder %s16, 0
      %p120 = por %p118, %p119
      %p121 = scmp.ne.s32.totalorder %s113, %s115
      %p122 = scmp.eq.s32.totalorder %s21, 1
      %p123 = por %p121, %p122
      %p124 = scmp.ne.s32.totalorder %s115, %s116
      %p125 = scmp.eq.s32.totalorder %s21, 0
      %p126 = por %p124, %p125
      %p127 = scmp.ne.s32.totalorder %s115, %s116
      %p128 = scmp.eq.s32.totalorder %s22, 1
      %p129 = por %p127, %p128
      %p131 = scmp.ne.s32.totalorder %s116, %s130
      %p132 = scmp.eq.s32.totalorder %s22, 0
      %p133 = por %p131, %p132
      %s135 = sadd.s32 %s134, 1
      %p138 = scmp.eq.s32.totalorder %s16, 1
      %p139 = scmp.ne.s32.totalorder %s134, %s136
      %p140 = scmp.eq.s32.totalorder %s16, 0
      %p141 = por %p139, %p140
      %p142 = scmp.ne.s32.totalorder %s134, %s136
      %p143 = scmp.eq.s32.totalorder %s21, 1
      %p144 = por %p142, %p143
      %p145 = scmp.ne.s32.totalorder %s136, %s137
      %p146 = scmp.eq.s32.totalorder %s21, 0
      %p147 = por %p145, %p146
      %p148 = scmp.ne.s32.totalorder %s136, %s137
      %p149 = scmp.eq.s32.totalorder %s22, 1
      %p150 = por %p148, %p149
      %p152 = scmp.ne.s32.totalorder %s137, %s151
      %p153 = scmp.eq.s32.totalorder %s22, 0
      %p154 = por %p152, %p153
      %s155 = ssub.s32 %s16, %s23
      %p156 = scmp.eq.s32.totalorder %s155, 0
      %s158 = sadd.s32 %s157, 1
      %s159 = scalar_select %p156, %s157, %s158
      %p162 = pneg %p156
      %p163 = scmp.eq.s32.totalorder %s16, 1
      %p164 = por %p162, %p163
      %p165 = scmp.ne.s32.totalorder %s157, %s160
      %p166 = scmp.eq.s32.totalorder %s16, 0
      %p167 = por %p165, %p166
      %p168 = scmp.ne.s32.totalorder %s157, %s160
      %p169 = scmp.eq.s32.totalorder %s21, 1
      %p170 = por %p168, %p169
      %p171 = scmp.ne.s32.totalorder %s160, %s161
      %p172 = scmp.eq.s32.totalorder %s21, 0
      %p173 = por %p171, %p172
      %p174 = scmp.ne.s32.totalorder %s160, %s161
      %p175 = scmp.eq.s32.totalorder %s22, 1
      %p176 = por %p174, %p175
      %p178 = scmp.ne.s32.totalorder %s161, %s177
      %p179 = scmp.eq.s32.totalorder %s22, 0
      %p180 = por %p178, %p179
      %p181 = scmp.le.s32.totalorder 1, %s16
      %p182 = scmp.lt.s32.totalorder %s16, 3
      %p183 = pnand %p181, %p182
      %p184 = pneg %p183
      // Predicated region
      $region9: #{tpu_custom_call.1} parent=5 // pred_check
        _
      $region10: #{tpu_custom_call.1} parent=5 // pred_check_branch
        %186 = sbr.rel (%p183) target = $region12
      $region11: #{tpu_custom_call.1} parent=5 // pred_region
        %s187 = ssub.s32 %s16, 1
        // Predicated region
        $region13: #{tpu_custom_call.1} parent=11 // pred_check
          %p188 = pneg %p63
        $region14: #{tpu_custom_call.1} parent=11 // pred_check_branch
          %190 = sbr.rel (%p188) target = $region16
        $region15: #{tpu_custom_call.1} parent=11 // pred_region
          _
        $region16: #{tpu_custom_call.1} parent=11 // pred_fallthru
          _
        // Predicated region
        $region17: #{tpu_custom_call.1} parent=11 // pred_check
          %p191 = pneg %p84
        $region18: #{tpu_custom_call.1} parent=11 // pred_check_branch
          %193 = sbr.rel (%p191) target = $region20
        $region19: #{tpu_custom_call.1} parent=11 // pred_region
          %s195 = ssub.s32 512, 512
          %196 = vsyncadd [#allocation3], %s195
          %s197 = sshll.u32 [#allocation2], 4
          %s198 = int_to_ptr.vmem [resolvable:$true] %s197
          %203 = dma.hbm_to_vmem [thread:$0]  %s2, 512, %s198, [#allocation3], 256, 256, 16
        $region20: #{tpu_custom_call.1} parent=11 // pred_fallthru
          _
        // Predicated region
        $region21: #{tpu_custom_call.1} parent=11 // pred_check
          %p204 = pneg %p105
        $region22: #{tpu_custom_call.1} parent=11 // pred_check_branch
          %206 = sbr.rel (%p204) target = $region24
        $region23: #{tpu_custom_call.1} parent=11 // pred_region
          _
        $region24: #{tpu_custom_call.1} parent=11 // pred_fallthru
          _
        // Predicated region
        $region25: #{tpu_custom_call.1} parent=11 // pred_check
          %p207 = pneg %p126
        $region26: #{tpu_custom_call.1} parent=11 // pred_check_branch
          %209 = sbr.rel (%p207) target = $region28
        $region27: #{tpu_custom_call.1} parent=11 // pred_region
          _
        $region28: #{tpu_custom_call.1} parent=11 // pred_fallthru
          _
        // Predicated region
        $region29: #{tpu_custom_call.1} parent=11 // pred_check
          %p210 = pneg %p147
        $region30: #{tpu_custom_call.1} parent=11 // pred_check_branch
          %212 = sbr.rel (%p210) target = $region32
        $region31: #{tpu_custom_call.1} parent=11 // pred_region
          _
        $region32: #{tpu_custom_call.1} parent=11 // pred_fallthru
          _
      $region12: #{tpu_custom_call.1} parent=5 // pred_fallthru
        _
      %p213 = scmp.lt.s32.totalorder %s16, 2
      // Predicated region
      $region33: #{tpu_custom_call.1} parent=5 // pred_check
        %p214 = pneg %p213
      $region34: #{tpu_custom_call.1} parent=5 // pred_check_branch
        %216 = sbr.rel (%p214) target = $region36
      $region35: #{tpu_custom_call.1} parent=5 // pred_region
        // Predicated region
        $region37: #{tpu_custom_call.1} parent=35 // pred_check
          %p217 = pneg %p36
        $region38: #{tpu_custom_call.1} parent=35 // pred_check_branch
          %219 = sbr.rel (%p217) target = $region40
        $region39: #{tpu_custom_call.1} parent=35 // pred_region
          %p220 = scmp.lt.s32.totalorder %s16, 1
          %s221 = scalar_select %p220, %s16, 1
          %s222 = smul.addr %s221, 2
          %s223 = smul.addr %s222, 8
          %s224 = scalar_lea.vmem %s0, %s223
        $region40: #{tpu_custom_call.1} parent=35 // pred_fallthru
          _
      $region36: #{tpu_custom_call.1} parent=5 // pred_fallthru
        _
      %p225 = scmp.le.s32.totalorder 1, %s16
      %p226 = scmp.lt.s32.totalorder %s16, 3
      %p227 = pnand %p225, %p226
      %p228 = pneg %p227
      // Predicated region
      $region41: #{tpu_custom_call.1} parent=5 // pred_check
        _
      $region42: #{tpu_custom_call.1} parent=5 // pred_check_branch
        %230 = sbr.rel (%p227) target = $region44
      $region43: #{tpu_custom_call.1} parent=5 // pred_region
        %s231 = ssub.s32 %s16, 1
        // Predicated region
        $region45: #{tpu_custom_call.1} parent=43 // pred_check
          %p232 = pneg %p84
        $region46: #{tpu_custom_call.1} parent=43 // pred_check_branch
          %234 = sbr.rel (%p232) target = $region48
        $region47: #{tpu_custom_call.1} parent=43 // pred_region
          %235 = dma.done [#allocation3], 512
        $region48: #{tpu_custom_call.1} parent=43 // pred_fallthru
          _
        %p236 = scmp.lt.s32.totalorder %s21, 1
        %s237 = scalar_select %p236, %s21, 1
        %s238 = smul.addr %s237, 2
        %s239 = smul.addr %s238, 8
        %s240 = scalar_lea.vmem %s0, %s239
        %p241 = pneg %p42
        %p242 = pneg %p39
        %p243 = pneg %p63
        %p244 = pneg %p60
        %p245 = pneg %p84
        %p246 = pneg %p81
        %p247 = pneg %p105
        %p248 = pneg %p102
        %p249 = pneg %p126
        %p250 = pneg %p123
        %p251 = pneg %p147
        %p252 = pneg %p144
        %p253 = pneg %p173
        %p254 = pneg %p170
        %s255 = sand.u32 %s160, 1
        %s256 = scalar_lea.sflag [#allocation4], %s255
        %s257 = sand.u32 %s160, 1
        %s258 = smul.addr %s257, 16
        %s259 = scalar_lea.vmem [#allocation5], %s258
        %p260 = scmp.lt.s32.totalorder %s21, 1
        %s261 = scalar_select %p260, %s21, 1
        %s262 = smul.addr %s261, 2
        %s263 = smul.addr %s262, 8
        %s264 = scalar_lea.vmem %s0, %s263
        %v266 = vld [vmem:[%s264] sm:$0xff]
        %v267 = vld [vmem:[%s264 + $0x8] sm:$0xff]
        %v268 = vld [vmem:[%s1] sm:$0xff]
        %v269 = vld [vmem:[#allocation2] sm:$0xff]
        %v270 = vld [vmem:[#allocation2 + $0x8] sm:$0xff]
        %v271 = vld [vmem:[#allocation2 + $0x10] sm:$0x1]
        %v272 = vld [vmem:[#allocation2 + $0x18] sm:$0x1]
        %274 = vset.pattern.permute.xlu0 4
        %275 = vperm.xlu0 %274, %v268
        %v276 = vpop.permute.xlu0 %275
        %v278 = vmul.f32 %v266, %v276
        %v279 = vmul.f32 %v267, %v276
        %280 = vrot.lane.b32.xlu0 %v266, 17
        %v281 = vpop.permute.xlu0 %280
        %282 = vrot.lane.b32.xlu0 %v267, 17
        %v283 = vpop.permute.xlu0 %282
        %v284 = vlaneseq
        %v285 = vand.u32 %v284, 127
        %vm286 = vcmp.lt.s32.totalorder %v285, 17
        %v287 = vsel %vm286, %v281, %v283
        %v288 = vsel %vm286, %v283, %v281
        %v289 = vlaneseq
        %v290 = vshrl.u32 %v289, 7
        %v291 = vsub.s32 0, %v290
        %v292 = vrot.slane %v269, %v291
        %v293 = vlaneseq
        %v294 = vshrl.u32 %v293, 7
        %v295 = vsub.s32 0, %v294
        %v296 = vrot.slane %v270, %v295
        %v297 = vmul.f32 %v288, %v292
        %v298 = vmul.f32 %v287, %v296
        %299 = vset.pattern.permute.xlu0 0
        %300 = vperm.xlu0 %299, %v268
        %v301 = vpop.permute.xlu0 %300
        %v303 = vmul.f32 %v297, %v301
        %v304 = vmul.f32 %v298, %v301
        %v305 = vadd.f32 %v278, %v303
        %v306 = vadd.f32 %v279, %v304
        %307 = vrot.lane.b32.xlu0 %v266, 16
        %v308 = vpop.permute.xlu0 %307
        %309 = vrot.lane.b32.xlu0 %v267, 16
        %v310 = vpop.permute.xlu0 %309
        %vm311 = vcmp.lt.s32.totalorder %v285, 16
        %v312 = vsel %vm311, %v308, %v310
        %v313 = vsel %vm311, %v310, %v308
        %v314 = vlaneseq
        %v315 = vshrl.u32 %v314, 7
        %v316 = vsub.s32 1, %v315
        %v317 = vrot.slane %v269, %v316
        %v318 = vlaneseq
        %v319 = vshrl.u32 %v318, 7
        %v320 = vsub.s32 1, %v319
        %v321 = vrot.slane %v270, %v320
        %v322 = vmul.f32 %v313, %v317
        %v323 = vmul.f32 %v312, %v321
        %324 = vset.pattern.permute.xlu0 1
        %325 = vperm.xlu0 %324, %v268
        %v326 = vpop.permute.xlu0 %325
        %v328 = vmul.f32 %v322, %v326
        %v329 = vmul.f32 %v323, %v326
        %v330 = vadd.f32 %v305, %v328
        %v331 = vadd.f32 %v306, %v329
        %332 = vrot.lane.b32.xlu0 %v266, 15
        %v333 = vpop.permute.xlu0 %332
        %334 = vrot.lane.b32.xlu0 %v267, 15
        %v335 = vpop.permute.xlu0 %334
        %vm336 = vcmp.lt.s32.totalorder %v285, 15
        %v337 = vsel %vm336, %v333, %v335
        %v338 = vsel %vm336, %v335, %v333
        %v339 = vlaneseq
        %v340 = vshrl.u32 %v339, 7
        %v341 = vsub.s32 2, %v340
        %v342 = vrot.slane %v269, %v341
        %v343 = vlaneseq
        %v344 = vshrl.u32 %v343, 7
        %v345 = vsub.s32 2, %v344
        %v346 = vrot.slane %v270, %v345
        %v347 = vmul.f32 %v338, %v342
        %v348 = vmul.f32 %v337, %v346
        %349 = vset.pattern.permute.xlu0 2
        %350 = vperm.xlu0 %349, %v268
        %v351 = vpop.permute.xlu0 %350
        %v353 = vmul.f32 %v347, %v351
        %v354 = vmul.f32 %v348, %v351
        %v355 = vadd.f32 %v330, %v353
        %v356 = vadd.f32 %v331, %v354
        %357 = vrot.lane.b32.xlu0 %v266, 1
        %v358 = vpop.permute.xlu0 %357
        %359 = vrot.lane.b32.xlu0 %v267, 1
        %v360 = vpop.permute.xlu0 %359
        %vm361 = vcmp.lt.s32.totalorder %v285, 1
        %v362 = vsel %vm361, %v358, %v360
        %v363 = vsel %vm361, %v360, %v358
        %v364 = vlaneseq
        %v365 = vshrl.u32 %v364, 7
        %v366 = vsub.s32 3, %v365
        %v367 = vrot.slane %v269, %v366
        %v368 = vlaneseq
        %v369 = vshrl.u32 %v368, 7
        %v370 = vsub.s32 3, %v369
        %v371 = vrot.slane %v270, %v370
        %v372 = vmul.f32 %v363, %v367
        %v373 = vmul.f32 %v362, %v371
        %374 = vset.pattern.permute.xlu0 3
        %375 = vperm.xlu0 %374, %v268
        %v376 = vpop.permute.xlu0 %375
        %v378 = vmul.f32 %v372, %v376
        %v379 = vmul.f32 %v373, %v376
        %v380 = vadd.f32 %v355, %v378
        %v381 = vadd.f32 %v356, %v379
        %382 = vrot.lane.b32.xlu0 %v266, 127
        %v383 = vpop.permute.xlu0 %382
        %384 = vrot.lane.b32.xlu0 %v267, 127
        %v385 = vpop.permute.xlu0 %384
        %vm386 = vcmp.lt.s32.totalorder %v285, 127
        %v387 = vsel %vm386, %v383, %v385
        %v388 = vsel %vm386, %v385, %v383
        %v389 = vlaneseq
        %v390 = vshrl.u32 %v389, 7
        %v391 = vsub.s32 5, %v390
        %v392 = vrot.slane %v269, %v391
        %v393 = vlaneseq
        %v394 = vshrl.u32 %v393, 7
        %v395 = vsub.s32 5, %v394
        %v396 = vrot.slane %v270, %v395
        %v397 = vmul.f32 %v387, %v392
        %v398 = vmul.f32 %v388, %v396
        %399 = vset.pattern.permute.xlu0 5
        %400 = vperm.xlu0 %399, %v268
        %v401 = vpop.permute.xlu0 %400
        %v403 = vmul.f32 %v397, %v401
        %v404 = vmul.f32 %v398, %v401
        %v405 = vadd.f32 %v380, %v403
        %v406 = vadd.f32 %v381, %v404
        %407 = vrot.lane.b32.xlu0 %v266, 113
        %v408 = vpop.permute.xlu0 %407
        %409 = vrot.lane.b32.xlu0 %v267, 113
        %v410 = vpop.permute.xlu0 %409
        %vm411 = vcmp.lt.s32.totalorder %v285, 113
        %v412 = vsel %vm411, %v408, %v410
        %v413 = vsel %vm411, %v410, %v408
        %v414 = vlaneseq
        %v415 = vshrl.u32 %v414, 7
        %v416 = vsub.s32 6, %v415
        %v417 = vrot.slane %v269, %v416
        %v418 = vlaneseq
        %v419 = vshrl.u32 %v418, 7
        %v420 = vsub.s32 6, %v419
        %v421 = vrot.slane %v270, %v420
        %v422 = vmul.f32 %v412, %v417
        %v423 = vmul.f32 %v413, %v421
        %424 = vset.pattern.permute.xlu0 6
        %425 = vperm.xlu0 %424, %v268
        %v426 = vpop.permute.xlu0 %425
        %v428 = vmul.f32 %v422, %v426
        %v429 = vmul.f32 %v423, %v426
        %v430 = vadd.f32 %v405, %v428
        %v431 = vadd.f32 %v406, %v429
        %432 = vrot.lane.b32.xlu0 %v266, 112
        %v433 = vpop.permute.xlu0 %432
        %434 = vrot.lane.b32.xlu0 %v267, 112
        %v435 = vpop.permute.xlu0 %434
        %vm436 = vcmp.lt.s32.totalorder %v285, 112
        %v437 = vsel %vm436, %v433, %v435
        %v438 = vsel %vm436, %v435, %v433
        %v439 = vlaneseq
        %v440 = vshrl.u32 %v439, 7
        %v441 = vsub.s32 7, %v440
        %v442 = vrot.slane %v269, %v441
        %v443 = vlaneseq
        %v444 = vshrl.u32 %v443, 7
        %v445 = vsub.s32 7, %v444
        %v446 = vrot.slane %v270, %v445
        %v447 = vmul.f32 %v437, %v442
        %v448 = vmul.f32 %v438, %v446
        %449 = vset.pattern.permute.xlu0 7
        %450 = vperm.xlu0 %449, %v268
        %v451 = vpop.permute.xlu0 %450
        %v453 = vmul.f32 %v447, %v451
        %v454 = vmul.f32 %v448, %v451
        %v455 = vadd.f32 %v430, %v453
        %v456 = vadd.f32 %v431, %v454
        %457 = vrot.lane.b32.xlu0 %v266, 111
        %v458 = vpop.permute.xlu0 %457
        %459 = vrot.lane.b32.xlu0 %v267, 111
        %v460 = vpop.permute.xlu0 %459
        %vm461 = vcmp.lt.s32.totalorder %v285, 111
        %v462 = vsel %vm461, %v458, %v460
        %v463 = vsel %vm461, %v460, %v458
        %v464 = vlaneseq
        %v465 = vshrl.u32 %v464, 7
        %v466 = vsub.s32 0, %v465
        %v467 = vrot.slane %v271, %v466
        %v468 = vlaneseq
        %v469 = vshrl.u32 %v468, 7
        %v470 = vsub.s32 0, %v469
        %v471 = vrot.slane %v272, %v470
        %v472 = vmul.f32 %v462, %v467
        %v473 = vmul.f32 %v463, %v471
        %474 = vset.pattern.permute.xlu0 8
        %475 = vperm.xlu0 %474, %v268
        %v476 = vpop.permute.xlu0 %475
        %v478 = vmul.f32 %v472, %v476
        %v479 = vmul.f32 %v473, %v476
        %v480 = vadd.f32 %v455, %v478
        %v481 = vadd.f32 %v456, %v479
        %v482 = vld [vmem:[%s3] sm:$0xff]
        %484 = vset.pattern.permute.xlu0 0
        %485 = vperm.xlu0 %484, %v482
        %v486 = vpop.permute.xlu0 %485
        %v488 = vadd.f32 %v480, %v486
        %v489 = vadd.f32 %v481, %v486
        %v490 = vxor.u32 %v488, 2147483648
        %v491 = vxor.u32 %v489, 2147483648
        %v492 = vmul.f32 %v490, 1.442695
        %v493 = vpow.pop %v492
        %v494 = vmul.f32 %v491, 1.442695
        %v495 = vpow.pop %v494
        %v496 = vadd.f32 %v493, 1.0
        %v497 = vadd.f32 %v495, 1.0
        %v498 = vrcp.pop %v496
        %v499 = vmul.f32 1.0, %v498
        %v500 = vrcp.pop %v497
        %v501 = vmul.f32 1.0, %v500
        %v502 = vmul.f32 %v488, %v499
        %v503 = vmul.f32 %v489, %v501
        %v504 = vld [vmem:[%s4] sm:$0xf]
        %v505 = vld [vmem:[%s4 + $0x4] sm:$0xf]
        %v506 = vpack.c.bf16 %v502, %v502
        %v507 = vpack.c.bf16 %v503, %v503
        %v508 = vld [vmem:[%s5] sm:$0xff]
        %v509 = vld [vmem:[%s5 + $0x8] sm:$0xff]
        %511 = vset.pattern.permute.xlu0 0
        %512 = vperm.xlu0 %511, %v508
        %v513 = vpop.permute.xlu0 %512
        %516 = vset.pattern.permute.xlu0 0
        %517 = vperm.xlu0 %516, %v509
        %v518 = vpop.permute.xlu0 %517
        %v522 = vunpack.c.l.b16 %v504
        %v523 = vunpack.c.l.b16 %v505
        %v524 = vpack.c.b16 %v523, %v522
        %vm525 = vcmask 64512
        %v527 = vsel %vm525, %v524, 0
        %vm529 = vcmask 1043456
        %v531 = vsel %vm529, %v506, 0
        %v534 = vsel %vm529, %v507, 0
        %536 = vmatprep.subr.bf16.mxu0 %v534
        %537 = vmatpush1.bf16.msra.mxu0 %v531
        %538 = vmatprep.subr.bf16.mxu0 0
        %539 = vmatpush1.bf16.msra.mxu0 0
        %540 = vmatprep.subr.bf16.mxu0 0
        %541 = vmatpush1.bf16.msra.mxu0 0
        %542 = vmatprep.subr.bf16.mxu0 0
        %543 = vmatpush1.bf16.msra.mxu0 0
        %544 = vmatprep.subr.bf16.mxu0 0
        %545 = vmatpush1.bf16.msra.mxu0 0
        %546 = vmatprep.subr.bf16.mxu0 0
        %547 = vmatpush1.bf16.msra.mxu0 0
        %548 = vmatprep.subr.bf16.mxu0 0
        %549 = vmatpush1.bf16.msra.mxu0 0
        %550 = vmatprep.subr.bf16.mxu0 0
        %551 = vmatpush1.bf16.msra.mxu0 0
        %552 = vmatprep.subr.bf16.mxu0 0
        %553 = vmatpush1.bf16.msra.mxu0 0
        %554 = vmatprep.subr.bf16.mxu0 0
        %555 = vmatpush1.bf16.msra.mxu0 0
        %556 = vmatprep.subr.bf16.mxu0 0
        %557 = vmatpush1.bf16.msra.mxu0 0
        %558 = vmatprep.subr.bf16.mxu0 0
        %559 = vmatpush1.bf16.msra.mxu0 0
        %560 = vmatprep.subr.bf16.mxu0 0
        %561 = vmatpush1.bf16.msra.mxu0 0
        %562 = vmatprep.subr.bf16.mxu0 0
        %563 = vmatpush1.bf16.msra.mxu0 0
        %564 = vmatprep.subr.bf16.mxu0 0
        %565 = vmatpush1.bf16.msra.mxu0 0
        %566 = vmatprep.subr.bf16.mxu0 0
        %567 = vmatpush1.bf16.msra.mxu0 0
        %568 = vmatprep.mubr.bf16.mxu0 0
        %569 = vmatmul.mubr.bf16.gmra.mrb[0].mxu0 %v527
        %v570 = vpop.f32.mrb[0].mxu0
        %v571 = vadd.f32 %v513, %v570
        %v572 = vpop.f32.mrb[0].mxu0
        %v573 = vadd.f32 %v513, %v572
        %v574 = vpop.f32.mrb[0].mxu0
        %v575 = vadd.f32 %v518, %v574
        %v576 = vpop.f32.mrb[0].mxu0
        %v577 = vadd.f32 %v518, %v576
        %578 = vdwg.mxu0
        %v579 = vxor.u32 %v571, 2147483648
        %v580 = vxor.u32 %v573, 2147483648
        %v581 = vxor.u32 %v575, 2147483648
        %v582 = vxor.u32 %v577, 2147483648
        %v583 = vmul.f32 %v579, 1.442695
        %v584 = vpow.pop %v583
        %v585 = vmul.f32 %v580, 1.442695
        %v586 = vpow.pop %v585
        %v587 = vmul.f32 %v581, 1.442695
        %v588 = vpow.pop %v587
        %v589 = vmul.f32 %v582, 1.442695
        %v590 = vpow.pop %v589
        %v591 = vadd.f32 %v584, 1.0
        %v592 = vadd.f32 %v586, 1.0
        %v593 = vadd.f32 %v588, 1.0
        %v594 = vadd.f32 %v590, 1.0
        %v595 = vrcp.pop %v591
        %v596 = vmul.f32 1.0, %v595
        %v597 = vrcp.pop %v592
        %v598 = vmul.f32 1.0, %v597
        %v599 = vrcp.pop %v593
        %v600 = vmul.f32 1.0, %v599
        %v601 = vrcp.pop %v594
        %v602 = vmul.f32 1.0, %v601
        %v603 = vmul.f32 %v571, %v596
        %v604 = vmul.f32 %v573, %v598
        %v605 = vmul.f32 %v575, %v600
        %v606 = vmul.f32 %v577, %v602
        %v607 = vpack.c.bf16 %v605, %v603
        %v608 = vpack.c.bf16 %v606, %v604
        %v611 = vunpack.c.l.b16 %v607
        %v612 = vunpack.c.l.b16 %v608
        %v613 = vunpack.c.h.b16 %v607
        %v614 = vunpack.c.h.b16 %v608
        %v615 = vpack.c.b16 %v612, %v611
        %v616 = vpack.c.b16 %v614, %v613
        %619 = vst [vmem:[%s259] sm:$0xff] %v615
        %620 = vst [vmem:[%s259 + $0x8] sm:$0xff] %v616
        %s621 = sand.u32 %s160, 1
        %s622 = scalar_lea.sflag [#allocation4], %s621
        %s623 = sand.u32 %s160, 1
        %s624 = smul.addr %s623, 16
        %s625 = scalar_lea.vmem [#allocation5], %s624
        // Predicated region
        $region49: #{tpu_custom_call.1} parent=43 // pred_check
          %p626 = pneg %p170
        $region50: #{tpu_custom_call.1} parent=43 // pred_check_branch
          %628 = sbr.rel (%p626) target = $region52
        $region51: #{tpu_custom_call.1} parent=43 // pred_region
          %s630 = ssub.s32 256, 256
          %631 = vsyncadd %s622, %s630
          %s632 = smul.addr %s21, 4
          %s633 = smul.addr %s632, 64
          %s634 = scalar_lea.hbm %s6, %s633
          %s635 = sshll.u32 %s625, 4
          %s636 = int_to_ptr.vmem [resolvable:$true] %s635
          %641 = dma.vmem_to_hbm [thread:$0]  %s636, 256, %s634, %s622, 128, 128, 8
        $region52: #{tpu_custom_call.1} parent=43 // pred_fallthru
          _
      $region44: #{tpu_custom_call.1} parent=5 // pred_fallthru
        _
      %p642 = scmp.le.s32.totalorder 2, %s16
      // Predicated region
      $region53: #{tpu_custom_call.1} parent=5 // pred_check
        %p643 = pneg %p642
      $region54: #{tpu_custom_call.1} parent=5 // pred_check_branch
        %645 = sbr.rel (%p643) target = $region56
      $region55: #{tpu_custom_call.1} parent=5 // pred_region
        %s646 = ssub.s32 %s16, 2
        // Predicated region
        $region57: #{tpu_custom_call.1} parent=55 // pred_check
          %p647 = pneg %p176
        $region58: #{tpu_custom_call.1} parent=55 // pred_check_branch
          %649 = sbr.rel (%p647) target = $region60
        $region59: #{tpu_custom_call.1} parent=55 // pred_region
          %s650 = sand.u32 %s161, 1
          %s651 = scalar_lea.sflag [#allocation4], %s650
          %s652 = sand.u32 %s161, 1
          %s653 = smul.addr %s652, 16
          %s654 = scalar_lea.vmem [#allocation5], %s653
          %655 = dma.done %s651, 256
        $region60: #{tpu_custom_call.1} parent=55 // pred_fallthru
          _
      $region56: #{tpu_custom_call.1} parent=5 // pred_fallthru
        _
    $region6: #{tpu_custom_call.1} parent=1 // loop_footer
      %s20 = sadd.s32 1, %s16
    $region7: #{tpu_custom_call.1} parent=1 // loop_footer_branch
      %15 = sbr.rel target = $region3
    $region8: #{tpu_custom_call.1} parent=1 // loop_exit
      _
    %656 = vsyncpa [#allocation3], 1
    %s657 = scalar_lea.sflag [#allocation3], 1
    %658 = vsyncpa %s657, 1
    %659 = vsyncpa [#allocation4], 1
    %s660 = scalar_lea.sflag [#allocation4], 1
    %661 = vsyncpa %s660, 1

</llo_original>
